<compile_context>
chip_gen: v6e
topology: v6e:2x2x1
jax: 0.10.0
libtpu: 0.0.40
codegen_flags: <defaults>
</compile_context>

<pallas_src>
import functools
import numpy as np
import jax
import jax.numpy as jnp
from jax import lax
from jax.experimental import pallas as pl
from jax.experimental.pallas import tpu as pltpu


def _decomp_kernel(p_ref, x_ref, w_ref, seasonal_ref, trend_ref, xpad_ref,
                   *, L, P, row_chunk):
    # p_ref:        [G] int32 (SMEM)  per-grid-step tap half-width (<= P)
    # x_ref:        [L, C]            input lane tile (x dtype)
    # w_ref:        [W, C] f32        per-lane tap weights (zero outside window)
    # seasonal_ref: [L, C]
    # trend_ref:    [L, C]
    # xpad_ref:     [L + 2P, C]       VMEM scratch (replicate-padded copy, x dtype)
    C = x_ref.shape[-1]

    # In-kernel replicate ("edge") padding: built once per grid step in VMEM,
    # so no HBM-materialized x_pad is ever transferred.
    xpad_ref[pl.ds(P, L), :] = x_ref[...]
    if P > 0:
        top = x_ref[pl.ds(0, 1), :]            # [1, C]
        bot = x_ref[pl.ds(L - 1, 1), :]        # [1, C]
        xpad_ref[pl.ds(0, P), :] = jnp.broadcast_to(top, (P, C))
        xpad_ref[pl.ds(P + L, P), :] = jnp.broadcast_to(bot, (P, C))

    # Dynamic tap bounds: weights are exactly zero outside [P - p, P + p], so
    # those taps are skipped entirely (scalar-prefetched p).
    p_b = p_ref[pl.program_id(0)]
    lo = P - p_b
    hi = P + p_b + 1

    n_chunks = (L + row_chunk - 1) // row_chunk          # static
    aligned = (L % row_chunk == 0) and (row_chunk % 8 == 0)

    def chunk_body(ci, carry):
        # Uniform chunk size: the tail chunk is clamped back (recomputing a few
        # overlapping rows is idempotent and keeps all slice sizes static).
        c0 = jnp.minimum(ci * row_chunk, L - row_chunk)
        if aligned:
            c0 = pl.multiple_of(c0, 8)

        def tap_body(m, acc):
            w_m = w_ref[pl.ds(m, 1), :]                      # [1, C] f32
            rows = xpad_ref[pl.ds(c0 + m, row_chunk), :]     # [rc, C]
            return acc + rows.astype(jnp.float32) * w_m

        acc = lax.fori_loop(lo, hi, tap_body,
                            jnp.zeros((row_chunk, C), jnp.float32))

        x_chunk = x_ref[pl.ds(c0, row_chunk), :].astype(jnp.float32)
        trend_ref[pl.ds(c0, row_chunk), :] = acc.astype(trend_ref.dtype)
        seasonal_ref[pl.ds(c0, row_chunk), :] = (x_chunk - acc).astype(seasonal_ref.dtype)
        return carry

    lax.fori_loop(0, n_chunks, chunk_body, 0)


class LearnableSeriesDecomp:
    def __init__(self, input_dim, init_kernel_size=25, max_kernel_size=50,
                 key=jax.random.PRNGKey(0)):
        self.input_dim = input_dim
        self.init_kernel_size = init_kernel_size
        self.max_kernel_size = max_kernel_size
        hidden = max(input_dim // 2, 4)

        k1, k2, k3, k4, k5 = jax.random.split(key, 5)
        # feature_specific_trend_weights: [D, 1, max_kernel_size], randn init
        tw = jax.random.normal(k1, (input_dim, 1, max_kernel_size), jnp.float32)
        if 0 < init_kernel_size <= max_kernel_size:
            tw = tw.at[:, :, :init_kernel_size].set(1.0 / init_kernel_size)
        self.trend_weights = tw

        # kernel_predictor: Linear(D, hidden) + ReLU + Linear(hidden, 1) + Sigmoid
        lim1 = 1.0 / np.sqrt(input_dim)
        lim2 = 1.0 / np.sqrt(hidden)
        self.w1 = jax.random.uniform(k2, (hidden, input_dim), jnp.float32, -lim1, lim1)
        self.b1 = jax.random.uniform(k3, (hidden,), jnp.float32, -lim1, lim1)
        self.w2 = jax.random.uniform(k4, (1, hidden), jnp.float32, -lim2, lim2)
        self.b2 = jax.random.uniform(k5, (1,), jnp.float32, -lim2, lim2)

    def __call__(self, x):
        B, L, D = x.shape
        assert D == self.input_dim
        K = self.max_kernel_size

        # --- static clamp of the reachable tap window (k <= min(K, L//2)) ----
        k_max = max(3, min(K, L // 2))
        if k_max % 2 == 0:
            k_max -= 1
        k_max = max(3, k_max)
        P = k_max // 2
        W = 2 * P + 1

        # --- glue: kernel-size prediction (tiny MLP) -------------------------
        x_global = x.mean(axis=1)                                   # [B, D]
        h = jax.nn.relu(x_global @ self.w1.T + self.b1)             # [B, H]
        kernel_logits = jax.nn.sigmoid(h @ self.w2.T + self.b2)     # [B, 1]
        pkf = kernel_logits[:, 0] * (K - 5) + 5                     # [B]
        k = jnp.round(pkf).astype(jnp.int32)
        k = jnp.maximum(3, jnp.minimum(jnp.minimum(k, K), L // 2))
        k = jnp.where(k % 2 == 0, k - 1, k)
        k = jnp.maximum(3, k)                                       # [B], odd, <= k_max
        p = (k // 2).astype(jnp.int32)                              # [B], <= P

        # --- glue: masked softmax over first k taps, re-indexed to offsets ---
        # Built directly in [B, W, D] layout so path A needs no transposes.
        w_raw = self.trend_weights[:, 0, :].T                       # [K, D]
        j_idx = jnp.arange(K)
        masked = jnp.where(j_idx[None, :, None] < k[:, None, None],
                           w_raw[None, :, :], -jnp.inf)             # [B, K, D]
        sm = jax.nn.softmax(masked, axis=1)                         # [B, K, D]

        m_idx = jnp.arange(W)
        j = m_idx[None, :] - P + p[:, None]                         # [B, W]
        valid = (j >= 0) & (j < k[:, None])
        jc = jnp.clip(j, 0, K - 1)
        gathered = jnp.take_along_axis(
            sm, jnp.broadcast_to(jc[:, :, None], (B, W, D)), axis=1)
        w_bwd = jnp.where(valid[:, :, None], gathered, 0.0)         # [B, W, D] f32

        itemsize = jnp.dtype(x.dtype).itemsize

        def _footprint(tile):
            # per-step VMEM: double-buffered input + 2 double-buffered outputs
            # + double-buffered weights + padded scratch
            return (2 * L * tile * itemsize + 4 * L * tile * itemsize
                    + 2 * W * tile * 4 + (L + 2 * P) * tile * itemsize)

        budget = 14 << 20   # conservative: fits v5e's 16 MiB default scoped VMEM

        if D >= 128:
            # ---- path A: keep x as [B, L, D]; BlockSpec expresses the layout
            tile_d = D
            for cand in (512, 256, 128):
                if D % cand == 0:
                    tile_d = cand
                    break
            while _footprint(tile_d) > budget and tile_d % 256 == 0:
                tile_d //= 2
            nd = D // tile_d
            row_chunk = min(L, max(8, ((16384 // tile_d) // 8) * 8))
            vmem_limit = int(min(48 << 20, max(16 << 20, 2 * _footprint(tile_d))))

            kernel = functools.partial(_decomp_kernel, L=L, P=P, row_chunk=row_chunk)
            seasonal, trend = pl.pallas_call(
                kernel,
                out_shape=(jax.ShapeDtypeStruct((B, L, D), x.dtype),
                           jax.ShapeDtypeStruct((B, L, D), x.dtype)),
                grid_spec=pltpu.PrefetchScalarGridSpec(
                    num_scalar_prefetch=1,
                    grid=(B, nd),
                    in_specs=[
                        pl.BlockSpec((None, L, tile_d), lambda b, d, pr: (b, 0, d)),
                        pl.BlockSpec((None, W, tile_d), lambda b, d, pr: (b, 0, d)),
                    ],
                    out_specs=(
                        pl.BlockSpec((None, L, tile_d), lambda b, d, pr: (b, 0, d)),
                        pl.BlockSpec((None, L, tile_d), lambda b, d, pr: (b, 0, d)),
                    ),
                    scratch_shapes=[pltpu.VMEM((L + 2 * P, tile_d), x.dtype)]),
                compiler_params=pltpu.CompilerParams(
                    dimension_semantics=("parallel", "parallel"),
                    vmem_limit_bytes=vmem_limit),
            )(p, x, w_bwd)
            return seasonal, trend

        # ---- path B: small D -> pack (b, d) onto lanes, padded to 128 -------
        C = B * D
        Cp = ((C + 127) // 128) * 128
        x_packed = jnp.transpose(x, (1, 0, 2)).reshape(L, C)        # [L, C]
        w_packed = jnp.transpose(w_bwd, (1, 0, 2)).reshape(W, C)    # [W, C] f32
        if Cp != C:
            x_packed = jnp.pad(x_packed, ((0, 0), (0, Cp - C)))
            w_packed = jnp.pad(w_packed, ((0, 0), (0, Cp - C)))

        # Lane tile: largest of 512/256/128 dividing Cp that still leaves a grid
        # of >= 2 steps (keeps both v7x TensorCores busy) when possible.
        tile_c = Cp
        for cand in (512, 256, 128):
            if Cp % cand == 0 and Cp // cand >= 2:
                tile_c = cand
                break
        while _footprint(tile_c) > budget and tile_c % 256 == 0:
            tile_c //= 2
        n_tiles = Cp // tile_c
        row_chunk = min(L, max(8, ((16384 // tile_c) // 8) * 8))
        vmem_limit = int(min(48 << 20, max(16 << 20, 2 * _footprint(tile_c))))

        # Batches share lanes in this path -> use the batch-max tap half-width.
        p_tile = jnp.full((n_tiles,), jnp.max(p), jnp.int32)

        kernel = functools.partial(_decomp_kernel, L=L, P=P, row_chunk=row_chunk)
        seasonal_p, trend_p = pl.pallas_call(
            kernel,
            out_shape=(jax.ShapeDtypeStruct((L, Cp), x.dtype),
                       jax.ShapeDtypeStruct((L, Cp), x.dtype)),
            grid_spec=pltpu.PrefetchScalarGridSpec(
                num_scalar_prefetch=1,
                grid=(n_tiles,),
                in_specs=[pl.BlockSpec((L, tile_c), lambda c, pr: (0, c)),
                          pl.BlockSpec((W, tile_c), lambda c, pr: (0, c))],
                out_specs=(pl.BlockSpec((L, tile_c), lambda c, pr: (0, c)),
                           pl.BlockSpec((L, tile_c), lambda c, pr: (0, c))),
                scratch_shapes=[pltpu.VMEM((L + 2 * P, tile_c), x.dtype)]),
            compiler_params=pltpu.CompilerParams(
                dimension_semantics=("parallel",),
                vmem_limit_bytes=vmem_limit),
        )(p_tile, x_packed, w_packed)

        seasonal = jnp.transpose(seasonal_p[:, :C].reshape(L, B, D), (1, 0, 2))
        trend = jnp.transpose(trend_p[:, :C].reshape(L, B, D), (1, 0, 2))
        return seasonal, trend


def _numpy_reference(x, mod):
    """Follows the PyTorch forward literally (per-sample Python k)."""
    x = np.asarray(x, np.float64)
    tw = np.asarray(mod.trend_weights, np.float64)
    w1, b1 = np.asarray(mod.w1, np.float64), np.asarray(mod.b1, np.float64)
    w2, b2 = np.asarray(mod.w2, np.float64), np.asarray(mod.b2, np.float64)
    K = mod.max_kernel_size
    B, L, D = x.shape
    xg = x.mean(axis=1)
    h = np.maximum(xg @ w1.T + b1, 0.0)
    sig = 1.0 / (1.0 + np.exp(-(h @ w2.T + b2)))
    pkf = sig * (K - 5) + 5
    seas, tre = [], []
    for b in range(B):
        kf = float(pkf[b, 0])
        k = max(3, min(int(round(kf)), K, L // 2))
        if k % 2 == 0:
            k -= 1
        k = max(3, k)
        w = tw[:, 0, :k]
        w = np.exp(w - w.max(axis=1, keepdims=True))
        w = w / w.sum(axis=1, keepdims=True)                    # [D, k]
        pad = k // 2
        xb = x[b]
        xb_pad = np.pad(xb, ((pad, pad), (0, 0)), mode='edge')  # [L+2*pad, D]
        tr = np.zeros((L, D))
        for t in range(L):
            tr[t] = np.sum(xb_pad[t:t + k].T * w, axis=1)
        tre.append(tr)
        seas.append(xb - tr)
    return np.stack(seas, 0), np.stack(tre, 0)


if __name__ == "__main__":
    key = jax.random.PRNGKey(0)
    k_param, k_x, k_param2, k_x2 = jax.random.split(key, 4)

    # Small-D case (lane-packing path B).
    B, L, D = 2, 32, 8
    mod = LearnableSeriesDecomp(D, init_kernel_size=25, max_kernel_size=50, key=k_param)
    x = jax.random.normal(k_x, (B, L, D), jnp.float32)
    seasonal, trend = mod(x)
    jax.block_until_ready((seasonal, trend))
    seas_ref, trend_ref = _numpy_reference(x, mod)
    np.testing.assert_allclose(np.asarray(trend), trend_ref, rtol=1e-4, atol=1e-5)
    np.testing.assert_allclose(np.asarray(seasonal), seas_ref, rtol=1e-4, atol=1e-5)

    # Autoformer-typical D >= 128 case (direct [B, L, D] BlockSpec path A).
    B2, L2, D2 = 2, 32, 128
    mod2 = LearnableSeriesDecomp(D2, init_kernel_size=25, max_kernel_size=50, key=k_param2)
    x2 = jax.random.normal(k_x2, (B2, L2, D2), jnp.float32)
    seasonal2, trend2 = mod2(x2)
    jax.block_until_ready((seasonal2, trend2))
    seas_ref2, trend_ref2 = _numpy_reference(x2, mod2)
    np.testing.assert_allclose(np.asarray(trend2), trend_ref2, rtol=1e-4, atol=1e-5)
    np.testing.assert_allclose(np.asarray(seasonal2), seas_ref2, rtol=1e-4, atol=1e-5)

    print("KERNEL_OK")
</pallas_src>

<mosaic_0001>
module attributes {stable_mosaic.version = 11 : i64} {
  func.func @_decomp_kernel(%arg0: i32, %arg1: memref<1xi32, #tpu.memory_space<smem>>, %arg2: memref<32x128xf32, #tpu.memory_space<vmem>>, %arg3: memref<15x128xf32, #tpu.memory_space<vmem>>, %arg4: memref<32x128xf32, #tpu.memory_space<vmem>>, %arg5: memref<32x128xf32, #tpu.memory_space<vmem>>, %arg6: memref<46x128xf32, #tpu.memory_space<vmem>>) attributes {dimension_semantics = [#tpu.dimension_semantics<parallel>], iteration_bounds = array<i64: 1>, scalar_prefetch = 1 : i64, scratch_operands = 1 : i64, tpu.core_type = #tpu.core_type<tc>, window_params = [{transform_indices = @transform_0, window_bounds = array<i64: 32, 128>}, {transform_indices = @transform_1, window_bounds = array<i64: 15, 128>}, {transform_indices = @transform_2, window_bounds = array<i64: 32, 128>}, {transform_indices = @transform_3, window_bounds = array<i64: 32, 128>}]} {
    %c0 = arith.constant 0 : index
    %c0_0 = arith.constant 0 : index
    %0 = vector.load %arg2[%c0, %c0_0] : memref<32x128xf32, #tpu.memory_space<vmem>>, vector<32x128xf32>
    %c7 = arith.constant 7 : index
    %c0_1 = arith.constant 0 : index
    %1 = vector.load %arg6[%c7, %c0_1] : memref<46x128xf32, #tpu.memory_space<vmem>>, vector<32x128xf32>
    tpu.vector_store %arg6[%c7, %c0_1], %0 {strides = array<i32>} : memref<46x128xf32, #tpu.memory_space<vmem>>, vector<32x128xf32>,
    %c0_2 = arith.constant 0 : index
    %c0_3 = arith.constant 0 : index
    %2 = vector.load %arg2[%c0_2, %c0_3] : memref<32x128xf32, #tpu.memory_space<vmem>>, vector<1x128xf32>
    %c31 = arith.constant 31 : index
    %c0_4 = arith.constant 0 : index
    %3 = vector.load %arg2[%c31, %c0_4] : memref<32x128xf32, #tpu.memory_space<vmem>>, vector<1x128xf32>
    %4 = vector.shape_cast %2 : vector<1x128xf32> to vector<1x128xf32>
    %5 = vector.broadcast %4 : vector<1x128xf32> to vector<7x128xf32>
    %c0_5 = arith.constant 0 : index
    %c0_6 = arith.constant 0 : index
    %6 = vector.load %arg6[%c0_5, %c0_6] : memref<46x128xf32, #tpu.memory_space<vmem>>, vector<7x128xf32>
    tpu.vector_store %arg6[%c0_5, %c0_6], %5 {strides = array<i32>} : memref<46x128xf32, #tpu.memory_space<vmem>>, vector<7x128xf32>,
    %7 = vector.shape_cast %3 : vector<1x128xf32> to vector<1x128xf32>
    %8 = vector.broadcast %7 : vector<1x128xf32> to vector<7x128xf32>
    %c39 = arith.constant 39 : index
    %c0_7 = arith.constant 0 : index
    %9 = vector.load %arg6[%c39, %c0_7] : memref<46x128xf32, #tpu.memory_space<vmem>>, vector<7x128xf32>
    tpu.vector_store %arg6[%c39, %c0_7], %8 {strides = array<i32>} : memref<46x128xf32, #tpu.memory_space<vmem>>, vector<7x128xf32>,
    %10 = arith.index_cast %arg0 : i32 to index
    %11 = memref.load %arg1[%10] : memref<1xi32, #tpu.memory_space<smem>>
    %c7_i32 = arith.constant 7 : i32
    %12 = arith.subi %c7_i32, %11 : i32
    %c7_i32_8 = arith.constant 7 : i32
    %13 = arith.addi %c7_i32_8, %11 : i32
    %c1_i32 = arith.constant 1 : i32
    %14 = arith.addi %13, %c1_i32 : i32
    %c0_i32 = arith.constant 0 : i32
    %c32_i32 = arith.constant 32 : i32
    %15 = arith.muli %c0_i32, %c32_i32 : i32
    %c0_i32_9 = arith.constant 0 : i32
    %16 = arith.minsi %15, %c0_i32_9 : i32
    %17 = tpu.assume_multiple %16, 8 : i32
    %cst = arith.constant 0.000000e+00 : f32
    %18 = vector.broadcast %cst : f32 to vector<32x128xf32>
    %19 = arith.subi %14, %12 : i32
    %20 = arith.addi %12, %19 : i32
    %c1_i32_10 = arith.constant 1 : i32
    %21 = scf.for %arg7 = %12 to %20 step %c1_i32_10 iter_args(%arg8 = %18) -> (vector<32x128xf32>)  : i32 {
      %29 = arith.index_cast %arg7 : i32 to index
      %c0_15 = arith.constant 0 : index
      %30 = vector.load %arg3[%29, %c0_15] : memref<15x128xf32, #tpu.memory_space<vmem>>, vector<1x128xf32>
      %31 = arith.addi %17, %arg7 : i32
      %32 = arith.index_cast %31 : i32 to index
      %c0_16 = arith.constant 0 : index
      %33 = vector.load %arg6[%32, %c0_16] : memref<46x128xf32, #tpu.memory_space<vmem>>, vector<32x128xf32>
      %34 = vector.broadcast %30 : vector<1x128xf32> to vector<32x128xf32>
      %35 = arith.mulf %33, %34 : vector<32x128xf32>
      %36 = arith.addf %arg8, %35 : vector<32x128xf32>
      scf.yield %36 : vector<32x128xf32>
    }
    %22 = arith.index_cast %17 : i32 to index
    %c0_11 = arith.constant 0 : index
    %23 = vector.load %arg2[%22, %c0_11] : memref<32x128xf32, #tpu.memory_space<vmem>>, vector<32x128xf32>
    %24 = arith.index_cast %17 : i32 to index
    %c0_12 = arith.constant 0 : index
    %25 = vector.load %arg5[%24, %c0_12] : memref<32x128xf32, #tpu.memory_space<vmem>>, vector<32x128xf32>
    tpu.vector_store %arg5[%24, %c0_12], %21 {strides = array<i32>} : memref<32x128xf32, #tpu.memory_space<vmem>>, vector<32x128xf32>,
    %26 = arith.subf %23, %21 : vector<32x128xf32>
    %27 = arith.index_cast %17 : i32 to index
    %c0_13 = arith.constant 0 : index
    %28 = vector.load %arg4[%27, %c0_13] : memref<32x128xf32, #tpu.memory_space<vmem>>, vector<32x128xf32>
    tpu.vector_store %arg4[%27, %c0_13], %26 {strides = array<i32>} : memref<32x128xf32, #tpu.memory_space<vmem>>, vector<32x128xf32>,
    %c1_i32_14 = arith.constant 1 : i32
    return
  }
  func.func @transform_0(%arg0: i32, %arg1: memref<1xi32, #tpu.memory_space<smem>>) -> (i32, i32) {
    %c0_i32 = arith.constant 0 : i32
    %c0_i32_0 = arith.constant 0 : i32
    return %c0_i32, %arg0 : i32, i32
  }
  func.func @transform_1(%arg0: i32, %arg1: memref<1xi32, #tpu.memory_space<smem>>) -> (i32, i32) {
    %c0_i32 = arith.constant 0 : i32
    %c0_i32_0 = arith.constant 0 : i32
    return %c0_i32, %arg0 : i32, i32
  }
  func.func @transform_2(%arg0: i32, %arg1: memref<1xi32, #tpu.memory_space<smem>>) -> (i32, i32) {
    %c0_i32 = arith.constant 0 : i32
    %c0_i32_0 = arith.constant 0 : i32
    return %c0_i32, %arg0 : i32, i32
  }
  func.func @transform_3(%arg0: i32, %arg1: memref<1xi32, #tpu.memory_space<smem>>) -> (i32, i32) {
    %c0_i32 = arith.constant 0 : i32
    %c0_i32_0 = arith.constant 0 : i32
    return %c0_i32, %arg0 : i32, i32
  }
}

</mosaic_0001>

<llo_original>
// kernel: tpu_custom_call.1
$region0: #{tpu_custom_call.1}
  #allocation0 [shape = 'u32[]', space=smem, size = 0x4, offset = 0x4, fixed_abs, tag = 'smem constant byte address 0x4 - core index']
  #allocation1 [shape = 'u32[144,128]{1,0:T(1,128)}', space=vmem, size = 0x12000, scoped, tag = 'internal scratch']
  #allocation2 [shape = 'f32[46,128]{1,0:T(8,128)}', space=vmem, size = 0x6000, scoped, tag = 'scratch operand']
  #allocation3 [shape = 's32[1]{0}', space=sflag, size = 0x4, scoped, tag = 'scoped memory for tpu_custom_call.1']
  #allocation4 [shape = 's32[1]{0:T(128)S(6)}', space=smem, size = 0x200, scoped, tag = 'prefetched SMEM operand 0']
  %s0 = inlined_call_operand.<no memory space> [shape: s32[1], index: 0, kind: input, shape index: {}]
  %s1 = inlined_call_operand.hbm [shape: f32[32,128], index: 1, kind: input, shape index: {}]
  %s2 = inlined_call_operand.hbm [shape: f32[15,128], index: 2, kind: input, shape index: {}]
  %s3 = inlined_call_operand.hbm [shape: f32[32,128], index: 3, kind: output, shape index: {0}]
  %s4 = inlined_call_operand.hbm [shape: f32[32,128], index: 4, kind: output, shape index: {1}]
  %5 = xla_tuple %s3, %s4
  %s6 = sld [smem:[#allocation0]]
  $region41: #{tpu_custom_call.1} parent=0
    _
  %s8 = ssub.s32 1, %s6
  %s9 = scalar_select 0, %s8, %s6
  %10 = sst [smem:[#allocation4]] %s0
  $region1: #{tpu_custom_call.1} parent=0
    #allocation5 [shape = 'u8[16384]{0}', space=vmem, size = 0x4000, scoped, tag = 'input window, operand 1, single buffered']
    #allocation6 [shape = 's32[1]{0}', space=sflag, size = 0x4, scoped, tag = 'scoped memory for tpu_custom_call.1']
    #allocation7 [shape = 's32[1]{0}', space=sflag, size = 0x4, scoped, tag = 'scoped memory for tpu_custom_call.1']
    #allocation8 [shape = 'u8[8192]{0}', space=vmem, size = 0x2000, scoped, tag = 'input window, operand 2, single buffered']
    #allocation9 [shape = 's32[1]{0}', space=sflag, size = 0x4, scoped, tag = 'scoped memory for tpu_custom_call.1']
    #allocation10 [shape = 'u8[16384]{0}', space=vmem, size = 0x4000, scoped, tag = 'output window, operand 0, single buffered']
    #allocation11 [shape = 'u8[16384]{0}', space=vmem, size = 0x4000, scoped, tag = 'output window, operand 1, single buffered']
    #allocation12 [shape = 's32[1]{0}', space=sflag, size = 0x4, scoped, tag = 'scoped memory for tpu_custom_call.1']
    %11 = vsyncpa [#allocation6], 0
    %12 = vsyncpa [#allocation9], 0
    %13 = vsyncpa [#allocation7], 0
    %14 = vsyncpa [#allocation12], 0
    // Predicated region
    $region2: #{tpu_custom_call.1} parent=1 // pred_check
      _
    $region3: #{tpu_custom_call.1} parent=1 // pred_check_branch
      %16 = sbr.rel (0) target = $region5
    $region4: #{tpu_custom_call.1} parent=1 // pred_region
      %s18 = ssub.s32 512, 512
      %19 = vsyncadd [#allocation6], %s18
      %s20 = sshll.u32 [#allocation5], 4
      %s21 = int_to_ptr.vmem [resolvable:$true] %s20
      %26 = dma.hbm_to_vmem [thread:$0]  %s1, 512, %s21, [#allocation6], 128, 128, 8
    $region5: #{tpu_custom_call.1} parent=1 // pred_fallthru
      _
    // Predicated region
    $region6: #{tpu_custom_call.1} parent=1 // pred_check
      _
    $region7: #{tpu_custom_call.1} parent=1 // pred_check_branch
      %28 = sbr.rel (0) target = $region9
    $region8: #{tpu_custom_call.1} parent=1 // pred_region
      %s30 = ssub.s32 256, 256
      %31 = vsyncadd [#allocation9], %s30
      %s32 = sshll.u32 [#allocation8], 4
      %s33 = int_to_ptr.vmem [resolvable:$true] %s32
      %38 = dma.hbm_to_vmem [thread:$0]  %s2, 256, %s33, [#allocation9], 128, 128, 8
    $region9: #{tpu_custom_call.1} parent=1 // pred_fallthru
      _
    // Predicated region
    $region10: #{tpu_custom_call.1} parent=1 // pred_check
      _
    $region11: #{tpu_custom_call.1} parent=1 // pred_check_branch
      %40 = sbr.rel (0) target = $region13
    $region12: #{tpu_custom_call.1} parent=1 // pred_region
      %41 = dma.done [#allocation6], 512
    $region13: #{tpu_custom_call.1} parent=1 // pred_fallthru
      _
    // Predicated region
    $region14: #{tpu_custom_call.1} parent=1 // pred_check
      _
    $region15: #{tpu_custom_call.1} parent=1 // pred_check_branch
      %43 = sbr.rel (0) target = $region17
    $region16: #{tpu_custom_call.1} parent=1 // pred_region
      %44 = dma.done [#allocation9], 256
    $region17: #{tpu_custom_call.1} parent=1 // pred_fallthru
      _
    %v45 = vld [vmem:[#allocation5] sm:$0xff]
    %v46 = vld [vmem:[#allocation5 + $0x8] sm:$0xff]
    %v47 = vld [vmem:[#allocation5 + $0x10] sm:$0xff]
    %v48 = vld [vmem:[#allocation5 + $0x18] sm:$0xff]
    %49 = vst [vmem:[#allocation2 + $0x7] sm:$0xff] %v45
    %50 = vst [vmem:[#allocation2 + $0xf] sm:$0xff] %v46
    %51 = vst [vmem:[#allocation2 + $0x17] sm:$0xff] %v47
    %52 = vst [vmem:[#allocation2 + $0x1f] sm:$0xff] %v48
    %v53 = vld [vmem:[#allocation5] sm:$0x1]
    %v54 = vld [vmem:[#allocation5 + $0x1f] sm:$0x1]
    %v55 = vlaneseq
    %v56 = vshrl.u32 %v55, 7
    %v57 = vsub.s32 0, %v56
    %v58 = vrot.slane %v53, %v57
    %59 = vst [vmem:[#allocation2] sm:$0x7f] %v58
    %v60 = vlaneseq
    %v61 = vshrl.u32 %v60, 7
    %v62 = vsub.s32 0, %v61
    %v63 = vrot.slane %v54, %v62
    %64 = vst [vmem:[#allocation2 + $0x27] sm:$0x7f] %v63
    %s65 = sld [smem:[#allocation4]]
    %s66 = ssub.s32 7, %s65
    %s67 = sadd.s32 %s65, 8
    // While loop
    $region18: #{tpu_custom_call.1} parent=1 // loop_pre_header
      _
    $region19: #{tpu_custom_call.1} parent=1 // loop_header
      %s69 = sphi %s66, %s71
      %p70 = scmp.ge.s32.totalorder %s69, %s67
      %v74 = vphi 0.0, %v94
      %v75 = vphi 0.0, %v95
      %v76 = vphi 0.0, %v96
      %v77 = vphi 0.0, %v97
    $region20: #{tpu_custom_call.1} parent=1 // loop_header_branch
      %73 = sbr.rel (%p70) target = $region24
    $region21: #{tpu_custom_call.1} parent=1 // loop_body
      %s78 = scalar_lea.vmem [#allocation8], %s69
      %v79 = vld [vmem:[%s78] sm:$0x1]
      %s80 = sadd.s32 0, %s69
      %s81 = scalar_lea.vmem [#allocation2], %s80
      %v82 = vld [vmem:[%s81] sm:$0xff]
      %v83 = vld [vmem:[%s81 + $0x8] sm:$0xff]
      %v84 = vld [vmem:[%s81 + $0x10] sm:$0xff]
      %v85 = vld [vmem:[%s81 + $0x18] sm:$0xff]
      %v86 = vlaneseq
      %v87 = vshrl.u32 %v86, 7
      %v88 = vsub.s32 0, %v87
      %v89 = vrot.slane %v79, %v88
      %v90 = vmul.f32 %v82, %v89
      %v91 = vmul.f32 %v83, %v89
      %v92 = vmul.f32 %v84, %v89
      %v93 = vmul.f32 %v85, %v89
      %v94 = vadd.f32 %v74, %v90
      %v95 = vadd.f32 %v75, %v91
      %v96 = vadd.f32 %v76, %v92
      %v97 = vadd.f32 %v77, %v93
    $region22: #{tpu_custom_call.1} parent=1 // loop_footer
      %s71 = sadd.s32 %s69, 1
    $region23: #{tpu_custom_call.1} parent=1 // loop_footer_branch
      %68 = sbr.rel target = $region19
    $region24: #{tpu_custom_call.1} parent=1 // loop_exit
      _
    %v98 = vld [vmem:[#allocation5] sm:$0xff]
    %v99 = vld [vmem:[#allocation5 + $0x8] sm:$0xff]
    %v100 = vld [vmem:[#allocation5 + $0x10] sm:$0xff]
    %v101 = vld [vmem:[#allocation5 + $0x18] sm:$0xff]
    %102 = vst [vmem:[#allocation11] sm:$0xff] %v74
    %103 = vst [vmem:[#allocation11 + $0x8] sm:$0xff] %v75
    %104 = vst [vmem:[#allocation11 + $0x10] sm:$0xff] %v76
    %105 = vst [vmem:[#allocation11 + $0x18] sm:$0xff] %v77
    %v106 = vsub.f32 %v98, %v74
    %v107 = vsub.f32 %v99, %v75
    %v108 = vsub.f32 %v100, %v76
    %v109 = vsub.f32 %v101, %v77
    %110 = vst [vmem:[#allocation10] sm:$0xff] %v106
    %111 = vst [vmem:[#allocation10 + $0x8] sm:$0xff] %v107
    %112 = vst [vmem:[#allocation10 + $0x10] sm:$0xff] %v108
    %113 = vst [vmem:[#allocation10 + $0x18] sm:$0xff] %v109
    // Predicated region
    $region25: #{tpu_custom_call.1} parent=1 // pred_check
      _
    $region26: #{tpu_custom_call.1} parent=1 // pred_check_branch
      %115 = sbr.rel (0) target = $region28
    $region27: #{tpu_custom_call.1} parent=1 // pred_region
      %s117 = ssub.s32 512, 512
      %118 = vsyncadd [#allocation7], %s117
      %s119 = sshll.u32 [#allocation10], 4
      %s120 = int_to_ptr.vmem [resolvable:$true] %s119
      %125 = dma.vmem_to_hbm [thread:$0]  %s120, 512, %s3, [#allocation7], 128, 128, 8
    $region28: #{tpu_custom_call.1} parent=1 // pred_fallthru
      _
    // Predicated region
    $region29: #{tpu_custom_call.1} parent=1 // pred_check
      _
    $region30: #{tpu_custom_call.1} parent=1 // pred_check_branch
      %127 = sbr.rel (0) target = $region32
    $region31: #{tpu_custom_call.1} parent=1 // pred_region
      %s129 = ssub.s32 512, 512
      %130 = vsyncadd [#allocation12], %s129
      %s131 = sshll.u32 [#allocation11], 4
      %s132 = int_to_ptr.vmem [resolvable:$true] %s131
      %137 = dma.vmem_to_hbm [thread:$0]  %s132, 512, %s4, [#allocation12], 128, 128, 8
    $region32: #{tpu_custom_call.1} parent=1 // pred_fallthru
      _
    // Predicated region
    $region33: #{tpu_custom_call.1} parent=1 // pred_check
      _
    $region34: #{tpu_custom_call.1} parent=1 // pred_check_branch
      %139 = sbr.rel (0) target = $region36
    $region35: #{tpu_custom_call.1} parent=1 // pred_region
      %140 = dma.done [#allocation7], 512
    $region36: #{tpu_custom_call.1} parent=1 // pred_fallthru
      _
    // Predicated region
    $region37: #{tpu_custom_call.1} parent=1 // pred_check
      _
    $region38: #{tpu_custom_call.1} parent=1 // pred_check_branch
      %142 = sbr.rel (0) target = $region40
    $region39: #{tpu_custom_call.1} parent=1 // pred_region
      %143 = dma.done [#allocation12], 512
    $region40: #{tpu_custom_call.1} parent=1 // pred_fallthru
      _
    %144 = vsyncpa [#allocation6], 1
    %145 = vsyncpa [#allocation9], 1
    %146 = vsyncpa [#allocation7], 1
    %147 = vsyncpa [#allocation12], 1

</llo_original>
